<compile_context>
chip_gen: v5e
topology: v5e:2x2
jax: 0.10.0
libtpu: 0.0.40
codegen_flags: <defaults>
</compile_context>

<pallas_src>
import numpy as np
import jax
import jax.numpy as jnp
from jax.experimental import pallas as pl
from jax.experimental.pallas import tpu as pltpu

F = 10  # feature dim of every Linear(10, 10)


def testnet_kernel(x_ref, wb_ref, o_ref):
    # Fully fused forward: one composed affine layer, then tanh(tanh(.)).
    x = x_ref[...]                                   # (B, F)
    w = wb_ref[:F, :]                                # (F, F) composed weight
    b = wb_ref[F:, :]                                # (1, F) composed bias (last row)
    y = jnp.dot(x, w, preferred_element_type=jnp.float32) + b
    y = jnp.tanh(y)                                  # backbone Tanh
    y = jnp.tanh(y)                                  # self.tanh
    o_ref[...] = y.astype(o_ref.dtype)


def fuse_affine_layers(ws, bs):
    """Compose 4 affine layers (each y = x @ W + b with W already (in, out))
    into a single augmented (F+1, F) slab: rows [0:F] = composed weight,
    row F = composed bias.  Done in float64 on host to minimize rounding
    drift vs. layer-by-layer f32 evaluation."""
    Wc = np.eye(F, dtype=np.float64)
    bc = np.zeros((1, F), dtype=np.float64)
    for W, b in zip(ws, bs):
        W64 = np.asarray(W, dtype=np.float64)
        b64 = np.asarray(b, dtype=np.float64).reshape(1, F)
        Wc = Wc @ W64
        bc = bc @ W64 + b64
    wb = np.concatenate([Wc, bc], axis=0).astype(np.float32)  # (F+1, F)
    return jnp.asarray(wb)


def testnet_forward(x, wb):
    """x: (B, F); wb: (F+1, F) composed weight with bias as the last row."""
    B = x.shape[0]
    vmem = pl.BlockSpec(memory_space=pltpu.MemorySpace.VMEM)  # whole-array, no tiling
    out = pl.pallas_call(
        testnet_kernel,
        out_shape=jax.ShapeDtypeStruct((B, F), jnp.float32),
        in_specs=[vmem, vmem],
        out_specs=vmem,
    )(x, wb)
    # The PyTorch module returns a (tensor, True) tuple.
    return out, True


def init_params(key):
    """Deterministic init matching nn.Linear(10, 10) shapes.
    PyTorch weight is (out, in); we store the transpose (in, out)."""
    ws, bs = [], []
    bound = 1.0 / np.sqrt(F)
    for _ in range(4):
        kw, kb, key = jax.random.split(key, 3)
        ws.append(jax.random.uniform(kw, (F, F), jnp.float32, -bound, bound))
        bs.append(jax.random.uniform(kb, (1, F), jnp.float32, -bound, bound))
    return ws, bs


if __name__ == "__main__":
    key = jax.random.PRNGKey(0)
    kx, kp = jax.random.split(key)

    B = 8
    x = jax.random.normal(kx, (B, F), jnp.float32)
    ws, bs = init_params(kp)
    wb = fuse_affine_layers(ws, bs)      # (F+1, F): 2 input DMAs total

    y, flag = testnet_forward(x, wb)
    jax.block_until_ready(y)

    # Reference: layer-by-layer math matching the PyTorch module
    # (lin1 -> lin2 -> lin3 -> backbone(Linear, Tanh) -> tanh).
    ref = x
    for W, b in zip(ws, bs):
        ref = ref @ W + b
    ref = jnp.tanh(jnp.tanh(ref))

    assert flag is True
    assert jnp.allclose(y, ref, atol=1e-5, rtol=1e-5), "mismatch vs reference"

    print("KERNEL_OK")
</pallas_src>

<mosaic_0001>
module attributes {stable_mosaic.version = 11 : i64} {
  func.func @testnet_kernel(%arg0: memref<8x10xf32, #tpu.memory_space<vmem>>, %arg1: memref<11x10xf32, #tpu.memory_space<vmem>>, %arg2: memref<8x10xf32, #tpu.memory_space<vmem>>) attributes {dimension_semantics = [], scalar_prefetch = 0 : i64, scratch_operands = 0 : i64, tpu.core_type = #tpu.core_type<tc>} {
    %c0 = arith.constant 0 : index
    %c0_0 = arith.constant 0 : index
    %0 = vector.load %arg0[%c0, %c0_0] : memref<8x10xf32, #tpu.memory_space<vmem>>, vector<8x10xf32>
    %c0_1 = arith.constant 0 : index
    %c0_2 = arith.constant 0 : index
    %1 = vector.load %arg1[%c0_1, %c0_2] : memref<11x10xf32, #tpu.memory_space<vmem>>, vector<10x10xf32>
    %c10 = arith.constant 10 : index
    %c0_3 = arith.constant 0 : index
    %2 = vector.load %arg1[%c10, %c0_3] : memref<11x10xf32, #tpu.memory_space<vmem>>, vector<1x10xf32>
    %cst = arith.constant dense<0.000000e+00> : vector<8x10xf32>
    %3 = tpu.matmul %0, %1, %cst {dimension_numbers = #tpu.dot_dimension_numbers<[1], [0], [0], [1], [0, 0, 1, 1], [], []>} : vector<8x10xf32>, vector<10x10xf32>, vector<8x10xf32> -> vector<8x10xf32>
    %4 = vector.broadcast %2 : vector<1x10xf32> to vector<8x10xf32>
    %5 = arith.addf %3, %4 : vector<8x10xf32>
    %6 = math.tanh %5 : vector<8x10xf32>
    %7 = math.tanh %6 : vector<8x10xf32>
    %c0_4 = arith.constant 0 : index
    %c0_5 = arith.constant 0 : index
    %8 = vector.load %arg2[%c0_4, %c0_5] : memref<8x10xf32, #tpu.memory_space<vmem>>, vector<8x10xf32>
    tpu.vector_store %arg2[%c0_4, %c0_5], %7 {strides = array<i32>} : memref<8x10xf32, #tpu.memory_space<vmem>>, vector<8x10xf32>,
    return
  }
}

</mosaic_0001>

<llo_original>
// kernel: tpu_custom_call.1
$region0: #{tpu_custom_call.1}
  #allocation0 [shape = 'u32[]', space=smem, size = 0x4, offset = 0x4, fixed_abs, tag = 'smem constant byte address 0x4 - core index']
  #allocation1 [shape = 'u32[72,128]{1,0:T(1,128)}', space=vmem, size = 0x9000, scoped, tag = 'internal scratch']
  %s0 = inlined_call_operand.hbm [shape: f32[8,10], index: 0, kind: input, shape index: {}]
  %s1 = inlined_call_operand.hbm [shape: f32[11,10], index: 1, kind: input, shape index: {}]
  %s2 = inlined_call_operand.hbm [shape: f32[8,10], index: 2, kind: output, shape index: {}]
  %s3 = sld [smem:[#allocation0]]
  $region26: #{tpu_custom_call.1} parent=0
    _
  %s5 = ssub.s32 1, %s3
  %s6 = scalar_select 0, %s5, %s3
  $region1: #{tpu_custom_call.1} parent=0
    #allocation2 [shape = 'u8[4096]{0}', space=vmem, size = 0x1000, scoped, tag = 'input window, operand 0, single buffered']
    #allocation3 [shape = 's32[1]{0}', space=sflag, size = 0x4, scoped, tag = 'scoped memory for tpu_custom_call.1']
    #allocation4 [shape = 's32[1]{0}', space=sflag, size = 0x4, scoped, tag = 'scoped memory for tpu_custom_call.1']
    #allocation5 [shape = 'u8[8192]{0}', space=vmem, size = 0x2000, scoped, tag = 'input window, operand 1, single buffered']
    #allocation6 [shape = 's32[1]{0}', space=sflag, size = 0x4, scoped, tag = 'scoped memory for tpu_custom_call.1']
    #allocation7 [shape = 'u8[4096]{0}', space=vmem, size = 0x1000, scoped, tag = 'output window, operand 0, single buffered']
    %7 = vsyncpa [#allocation3], 0
    %8 = vsyncpa [#allocation6], 0
    %9 = vsyncpa [#allocation4], 0
    // Predicated region
    $region2: #{tpu_custom_call.1} parent=1 // pred_check
      _
    $region3: #{tpu_custom_call.1} parent=1 // pred_check_branch
      %11 = sbr.rel (0) target = $region5
    $region4: #{tpu_custom_call.1} parent=1 // pred_region
      %13 = vsyncadd [#allocation3], 0
      %s15 = sshll.u32 %s0, 4
      %s16 = int_to_ptr.hbm [resolvable:$true] %s15
      %s17 = sshll.u32 [#allocation2], 4
      %s18 = int_to_ptr.vmem [resolvable:$true] %s17
      %20 = dma.hbm_to_vmem [thread:$0]  %s16, 128, %s18, [#allocation3]
    $region5: #{tpu_custom_call.1} parent=1 // pred_fallthru
      _
    // Predicated region
    $region6: #{tpu_custom_call.1} parent=1 // pred_check
      _
    $region7: #{tpu_custom_call.1} parent=1 // pred_check_branch
      %22 = sbr.rel (0) target = $region9
    $region8: #{tpu_custom_call.1} parent=1 // pred_region
      %24 = vsyncadd [#allocation6], 0
      %s25 = sshll.u32 %s1, 4
      %s26 = int_to_ptr.hbm [resolvable:$true] %s25
      %s27 = sshll.u32 [#allocation5], 4
      %s28 = int_to_ptr.vmem [resolvable:$true] %s27
      %33 = dma.hbm_to_vmem [thread:$0]  %s26, 256, %s28, [#allocation6], 128, 128, 8
    $region9: #{tpu_custom_call.1} parent=1 // pred_fallthru
      _
    // Predicated region
    $region10: #{tpu_custom_call.1} parent=1 // pred_check
      _
    $region11: #{tpu_custom_call.1} parent=1 // pred_check_branch
      %35 = sbr.rel (0) target = $region13
    $region12: #{tpu_custom_call.1} parent=1 // pred_region
      %37 = dma.done [#allocation3], 128
    $region13: #{tpu_custom_call.1} parent=1 // pred_fallthru
      _
    // Predicated region
    $region14: #{tpu_custom_call.1} parent=1 // pred_check
      _
    $region15: #{tpu_custom_call.1} parent=1 // pred_check_branch
      %39 = sbr.rel (0) target = $region17
    $region16: #{tpu_custom_call.1} parent=1 // pred_region
      %41 = dma.done [#allocation6], 256
    $region17: #{tpu_custom_call.1} parent=1 // pred_fallthru
      _
    %v42 = vld [vmem:[#allocation2] sm:$0xff]
    %v43 = vld [vmem:[#allocation5] sm:$0xff]
    %v44 = vld [vmem:[#allocation5 + $0x8] sm:$0x3]
    %v45 = vld [vmem:[#allocation5 + $0xa] sm:$0x1]
    %v46 = vperm.slane %v45, 0
    %vm47 = vcmask 80896
    %v49 = vsel %vm47, %v42, 0
    %vm51 = vcmask 1041408
    %v53 = vsel %vm51, %v44, 0
    %55 = vmatpush.msra.mxu0 0.0
    %56 = vmatpush.msra.mxu0 0.0
    %57 = vmatpush.msra.mxu0 0.0
    %58 = vmatpush.msra.mxu0 0.0
    %59 = vmatpush.msra.mxu0 0.0
    %60 = vmatpush.msra.mxu0 0.0
    %61 = vmatpush.msra.mxu0 0.0
    %62 = vmatpush.msra.mxu0 0.0
    %63 = vmatpush.msra.mxu0 0.0
    %64 = vmatpush.msra.mxu0 0.0
    %65 = vmatpush.msra.mxu0 0.0
    %66 = vmatpush.msra.mxu0 0.0
    %67 = vmatpush.msra.mxu0 0.0
    %68 = vmatpush.msra.mxu0 0.0
    %69 = vmatpush.msra.mxu0 %v53
    %70 = vmatpush.msra.mxu0 %v43
    %71 = vmatmul.f32.gmra.mxu0 %v49
    %v72 = vpop.f32.mrf.mxu0
    %v73 = vadd.f32 %v46, %v72
    %74 = vdwg.mxu0
    %v75 = vtanh.pop %v73
    %v76 = vtanh.pop %v75
    %77 = vst.msk [vmem:[#allocation7] sm:$0xff] %vm47, %v76
    // Predicated region
    $region18: #{tpu_custom_call.1} parent=1 // pred_check
      _
    $region19: #{tpu_custom_call.1} parent=1 // pred_check_branch
      %79 = sbr.rel (0) target = $region21
    $region20: #{tpu_custom_call.1} parent=1 // pred_region
      %81 = vsyncadd [#allocation4], 0
      %s83 = sshll.u32 [#allocation7], 4
      %s84 = int_to_ptr.vmem [resolvable:$true] %s83
      %s85 = sshll.u32 %s2, 4
      %s86 = int_to_ptr.hbm [resolvable:$true] %s85
      %88 = dma.vmem_to_hbm [thread:$0]  %s84, 128, %s86, [#allocation4]
    $region21: #{tpu_custom_call.1} parent=1 // pred_fallthru
      _
    // Predicated region
    $region22: #{tpu_custom_call.1} parent=1 // pred_check
      _
    $region23: #{tpu_custom_call.1} parent=1 // pred_check_branch
      %90 = sbr.rel (0) target = $region25
    $region24: #{tpu_custom_call.1} parent=1 // pred_region
      %92 = dma.done [#allocation4], 128
    $region25: #{tpu_custom_call.1} parent=1 // pred_fallthru
      _
    %93 = vsyncpa [#allocation3], 1
    %94 = vsyncpa [#allocation6], 1
    %95 = vsyncpa [#allocation4], 1

</llo_original>
